<compile_context>
chip_gen: v7x
topology: tpu7x:2x2x1
jax: 0.10.0
libtpu: 0.0.40
codegen_flags: <defaults>
</compile_context>

<pallas_src>
import functools
from math import sqrt

import jax
import jax.numpy as jnp
import numpy as np
from jax.experimental import pallas as pl
from jax.experimental.pallas import tpu as pltpu


def _round_up(x, m):
    return (x + m - 1) // m * m


def _cdiv(a, b):
    return (a + b - 1) // b


# ----------------------------- kernels -------------------------------------

def _linear_kernel(x_ref, w_ref, b_ref, o_ref):
    # Single K block: one fused bf16 MXU matmul, f32 accumulation, bias epilogue.
    # The equalized-LR scale is already folded into w_ref (wrapper, one time).
    x = x_ref[...].astype(jnp.bfloat16)
    acc = jnp.dot(x, w_ref[...], preferred_element_type=jnp.float32)
    o_ref[...] = (acc + b_ref[...]).astype(o_ref.dtype)


def _linear_kernel_ktiled(x_ref, w_ref, b_ref, o_ref, acc_ref):
    # K-tiled case (large in_features): f32 VMEM accumulator across the
    # "arbitrary" K grid axis; init at k==0, bias + writeback at k==last.
    k = pl.program_id(1)

    @pl.when(k == 0)
    def _():
        acc_ref[...] = jnp.zeros_like(acc_ref)

    x = x_ref[...].astype(jnp.bfloat16)
    acc_ref[...] += jnp.dot(x, w_ref[...], preferred_element_type=jnp.float32)

    @pl.when(k == pl.num_programs(1) - 1)
    def _():
        o_ref[...] = (acc_ref[...] + b_ref[...]).astype(o_ref.dtype)


# ----------------------------- wrapper --------------------------------------

def equalized_linear(x, weight, bias, *, block_m=512, max_k_block=2048,
                     min_pallas_rows=256):
    """y = F.linear(x, weight / sqrt(in_features), bias) for x of shape [..., in]."""
    *lead, in_f = x.shape
    out_f, in_f_w = weight.shape
    assert in_f == in_f_w
    scale = 1.0 / sqrt(in_f)

    m = int(np.prod(lead)) if lead else 1
    x2 = x.reshape(m, in_f)

    # One-time parameter prep: equalized-LR scale fused into the transpose+cast
    # (no extra HBM pass), [in, out] layout for a lane-dense output, bf16 MXU.
    w_t = (jnp.transpose(weight, (1, 0)).astype(jnp.float32) * scale
           ).astype(jnp.bfloat16)
    b1 = bias.astype(jnp.float32)

    # Small-problem fallback: XLA's fused dot beats pallas_call fixed overhead.
    if m < min_pallas_rows:
        y = (jnp.dot(x2.astype(jnp.bfloat16), w_t,
                     preferred_element_type=jnp.float32) + b1).astype(x.dtype)
        return y.reshape(*lead, out_f)

    # --- N: pad out_features to a 128-lane multiple (unmasked vst writeback).
    # TODO(synk): add N tiling for very wide out_features (>~4K) so the output
    # block does not blow the VMEM budget; StyleGAN widths (<=1K) are fine.
    n_pad = _round_up(out_f, 128)
    if n_pad != out_f:
        w_t = jnp.pad(w_t, ((0, 0), (0, n_pad - out_f)))
        b1 = jnp.pad(b1, (0, n_pad - out_f))
    b2 = b1.reshape(1, n_pad)

    # --- K: weight fully resident when small; otherwise tile the reduction
    # axis (v7x VMEM budget). Ragged K tails are ZERO-padded, never dropped.
    if in_f <= max_k_block:
        tk, k_steps = in_f, 1
    else:
        cands = [c for c in (2048, 1536, 1024, 512, 256, 128)
                 if c <= max(max_k_block, 128)]
        tk = next((c for c in cands if in_f % c == 0), cands[-1])
        k_full = _round_up(in_f, tk)
        if k_full != in_f:
            x2 = jnp.pad(x2, ((0, 0), (0, k_full - in_f)))
            w_t = jnp.pad(w_t, ((0, k_full - in_f), (0, 0)))
        k_steps = k_full // tk

    # --- M: ragged grid (no pad / no slice over M); guarantee >= 2 row tiles
    # when m <= block_m so v7x's two TensorCores both get work.
    if m > block_m:
        tm = block_m
    else:
        tm = _round_up(_cdiv(m, 2), 8)
    m_steps = _cdiv(m, tm)

    # --- VMEM budget: only set an explicit limit when the working set exceeds
    # v5e's 16 MiB default scoped VMEM (cap well under v7x's 64 MiB physical).
    x_bytes = jnp.dtype(x.dtype).itemsize
    est = (2 * tm * tk * x_bytes            # x double-buffer
           + 2 * tk * n_pad * 2             # bf16 weight double-buffer
           + 2 * tm * n_pad * x_bytes       # output double-buffer
           + 2 * n_pad * 4                  # bias
           + (tm * n_pad * 4 if k_steps > 1 else 0))   # f32 accumulator
    vmem_limit = (min(int(est * 1.5) + (4 << 20), 56 << 20)
                  if est > (12 << 20) else None)

    if k_steps == 1:
        out = pl.pallas_call(
            _linear_kernel,
            out_shape=jax.ShapeDtypeStruct((m, n_pad), x.dtype),
            grid=(m_steps,),
            in_specs=[
                pl.BlockSpec((tm, tk), lambda i: (i, 0)),
                pl.BlockSpec((tk, n_pad), lambda i: (0, 0)),   # weight: resident
                pl.BlockSpec((1, n_pad), lambda i: (0, 0)),    # bias:   resident
            ],
            out_specs=pl.BlockSpec((tm, n_pad), lambda i: (i, 0)),
            compiler_params=pltpu.CompilerParams(
                dimension_semantics=("parallel",),
                vmem_limit_bytes=vmem_limit),
        )(x2, w_t, b2)
    else:
        out = pl.pallas_call(
            _linear_kernel_ktiled,
            out_shape=jax.ShapeDtypeStruct((m, n_pad), x.dtype),
            grid=(m_steps, k_steps),
            in_specs=[
                pl.BlockSpec((tm, tk), lambda i, k: (i, k)),
                pl.BlockSpec((tk, n_pad), lambda i, k: (k, 0)),
                pl.BlockSpec((1, n_pad), lambda i, k: (0, 0)),
            ],
            out_specs=pl.BlockSpec((tm, n_pad), lambda i, k: (i, 0)),
            scratch_shapes=[pltpu.VMEM((tm, n_pad), jnp.float32)],
            compiler_params=pltpu.CompilerParams(
                dimension_semantics=("parallel", "arbitrary"),
                vmem_limit_bytes=vmem_limit),
        )(x2, w_t, b2)

    if n_pad != out_f:
        out = out[:, :out_f]
    return out.reshape(*lead, out_f)


# ----------------------------- reference ------------------------------------

def _reference(x, weight, bias):
    # Plain-JAX replica of the PyTorch forward: F.linear(x, weight*c, bias).
    scale = 1.0 / sqrt(weight.shape[1])
    w = weight.astype(jnp.float32) * scale
    y = jnp.dot(x.astype(jnp.float32), w.T,
                precision=jax.lax.Precision.HIGHEST) + bias.astype(jnp.float32)
    return y.astype(x.dtype)


if __name__ == "__main__":
    key = jax.random.PRNGKey(0)
    k1, k2, k3, k4 = jax.random.split(key, 4)

    # Test 1: shipped-style config (in=32, out=64). Exercises the single-K
    # kernel, the ragged M grid (768 rows -> tiles of 512), and the N padding
    # 64 -> 128 lanes.
    B, S, IN_F, OUT_F = 2, 384, 32, 64
    x = jax.random.normal(k1, (B, S, IN_F), dtype=jnp.float32)
    weight = jax.random.normal(k2, (OUT_F, IN_F), dtype=jnp.float32)  # [out, in]
    bias = jnp.ones((OUT_F,), dtype=jnp.float32) * 0.5

    out = jax.block_until_ready(equalized_linear(x, weight, bias))
    ref = jax.block_until_ready(_reference(x, weight, bias))
    assert out.shape == (B, S, OUT_F)
    assert jnp.allclose(out, ref, rtol=2e-2, atol=2e-2), \
        f"test1 max abs err {jnp.max(jnp.abs(out - ref))}"

    # Test 2: force the K-tiled accumulator path (2 K steps of 128) at small
    # shapes; also a non-128-aligned out_features (96 -> 128).
    B2, S2, IN_F2, OUT_F2 = 2, 200, 256, 96
    x_b = jax.random.normal(k3, (B2, S2, IN_F2), dtype=jnp.float32)
    w_b = jax.random.normal(k4, (OUT_F2, IN_F2), dtype=jnp.float32)
    b_b = jnp.ones((OUT_F2,), dtype=jnp.float32) * 0.1

    out2 = jax.block_until_ready(
        equalized_linear(x_b, w_b, b_b, max_k_block=128))
    ref2 = jax.block_until_ready(_reference(x_b, w_b, b_b))
    assert out2.shape == (B2, S2, OUT_F2)
    assert jnp.allclose(out2, ref2, rtol=2e-2, atol=2e-2), \
        f"test2 max abs err {jnp.max(jnp.abs(out2 - ref2))}"

    print("KERNEL_OK")
</pallas_src>

<mosaic_0001>
module attributes {stable_mosaic.version = 11 : i64} {
  func.func @_linear_kernel(%arg0: i32, %arg1: memref<512x32xf32, #tpu.memory_space<vmem>>, %arg2: memref<32x128xbf16, #tpu.memory_space<vmem>>, %arg3: memref<1x128xf32, #tpu.memory_space<vmem>>, %arg4: memref<512x128xf32, #tpu.memory_space<vmem>>) attributes {dimension_semantics = [#tpu.dimension_semantics<parallel>], iteration_bounds = array<i64: 2>, scalar_prefetch = 0 : i64, scratch_operands = 0 : i64, tpu.core_type = #tpu.core_type<tc>, window_params = [{transform_indices = @transform_0, window_bounds = array<i64: 512, 32>}, {pipeline_mode = #tpu.pipeline_mode<synchronous>, transform_indices = @transform_1, window_bounds = array<i64: 32, 128>}, {pipeline_mode = #tpu.pipeline_mode<synchronous>, transform_indices = @transform_2, window_bounds = array<i64: 1, 128>}, {transform_indices = @transform_3, window_bounds = array<i64: 512, 128>}]} {
    %c0 = arith.constant 0 : index
    %c0_0 = arith.constant 0 : index
    %0 = vector.load %arg1[%c0, %c0_0] : memref<512x32xf32, #tpu.memory_space<vmem>>, vector<512x32xf32>
    %1 = arith.truncf %0 : vector<512x32xf32> to vector<512x32xbf16>
    %c0_1 = arith.constant 0 : index
    %c0_2 = arith.constant 0 : index
    %2 = vector.load %arg2[%c0_1, %c0_2] : memref<32x128xbf16, #tpu.memory_space<vmem>>, vector<32x128xbf16>
    %cst = arith.constant dense<0.000000e+00> : vector<512x128xf32>
    %3 = tpu.matmul %1, %2, %cst {dimension_numbers = #tpu.dot_dimension_numbers<[1], [0], [0], [1], [0, 0, 1, 1], [], []>} : vector<512x32xbf16>, vector<32x128xbf16>, vector<512x128xf32> -> vector<512x128xf32>
    %c0_3 = arith.constant 0 : index
    %c0_4 = arith.constant 0 : index
    %4 = vector.load %arg3[%c0_3, %c0_4] : memref<1x128xf32, #tpu.memory_space<vmem>>, vector<1x128xf32>
    %5 = vector.broadcast %4 : vector<1x128xf32> to vector<512x128xf32>
    %6 = arith.addf %3, %5 : vector<512x128xf32>
    %c0_5 = arith.constant 0 : index
    %c0_6 = arith.constant 0 : index
    %7 = vector.load %arg4[%c0_5, %c0_6] : memref<512x128xf32, #tpu.memory_space<vmem>>, vector<512x128xf32>
    tpu.vector_store %arg4[%c0_5, %c0_6], %6 {strides = array<i32>} : memref<512x128xf32, #tpu.memory_space<vmem>>, vector<512x128xf32>,
    return
  }
  func.func @transform_0(%arg0: i32) -> (i32, i32) {
    %c0_i32 = arith.constant 0 : i32
    %c0_i32_0 = arith.constant 0 : i32
    return %arg0, %c0_i32 : i32, i32
  }
  func.func @transform_1(%arg0: i32) -> (i32, i32) {
    %c0_i32 = arith.constant 0 : i32
    %c0_i32_0 = arith.constant 0 : i32
    %c0_i32_1 = arith.constant 0 : i32
    return %c0_i32, %c0_i32_0 : i32, i32
  }
  func.func @transform_2(%arg0: i32) -> (i32, i32) {
    %c0_i32 = arith.constant 0 : i32
    %c0_i32_0 = arith.constant 0 : i32
    %c0_i32_1 = arith.constant 0 : i32
    return %c0_i32, %c0_i32_0 : i32, i32
  }
  func.func @transform_3(%arg0: i32) -> (i32, i32) {
    %c0_i32 = arith.constant 0 : i32
    %c0_i32_0 = arith.constant 0 : i32
    return %arg0, %c0_i32 : i32, i32
  }
}

</mosaic_0001>

<llo_original>
// kernel: tpu_custom_call.1
$region0: #{tpu_custom_call.1}
  #allocation0 [shape = 'u32[]', space=smem, size = 0x4, offset = 0x4, fixed_abs, tag = 'smem constant byte address 0x4 - core index']
  #allocation1 [shape = 'u32[144,128]{1,0:T(1,128)}', space=vmem, size = 0x12000, scoped, tag = 'internal scratch']
  %s0 = inlined_call_operand.vmem [shape: f32[768,32], index: 0, kind: input, shape index: {}]
  %s1 = inlined_call_operand.vmem [shape: bf16[32,128], index: 1, kind: input, shape index: {}]
  %s2 = inlined_call_operand.vmem [shape: f32[1,128], index: 2, kind: input, shape index: {}]
  %s3 = inlined_call_operand.hbm [shape: f32[768,128], index: 3, kind: output, shape index: {}]
  %s4 = sld [smem:[#allocation0]]
  $region45: #{tpu_custom_call.1} parent=0
    _
  %s6 = ssub.s32 1, %s4
  %s7 = scalar_select 0, %s6, %s4
  $region1: #{tpu_custom_call.1} parent=0
    #allocation2 [shape = 'u8[524288]{0}', space=vmem, size = 0x80000, scoped, tag = 'output window, operand 0']
    #allocation3 [shape = 's32[2]{0}', space=sflag, size = 0x8, scoped, tag = 'scoped memory for tpu_custom_call.1']
    %8 = vsyncpa [#allocation3], 0
    %s9 = scalar_lea.sflag [#allocation3], 1
    %10 = vsyncpa %s9, 0
    loop: start=0, step=1, limit=4
    $region2: #{tpu_custom_call.1} parent=1 // loop_pre_header
      _
    $region3: #{tpu_custom_call.1} parent=1 // loop_header
      %s12 = sphi 0, %s16
      %p13 = scmp.ge.s32.totalorder %s12, 4
      %s22 = sphi 0, %s24
      %s25 = sphi 0, %s22
      %s26 = sphi 0, %s25
      %s42 = sphi 0, %s26
      %s46 = sphi 0, %s46
      %s48 = sphi 0, %s46
      %s49 = sphi 0, %s48
      %s63 = sphi 0, %s49
      %s67 = sphi 0, %s67
      %s69 = sphi 0, %s67
      %s70 = sphi 0, %s69
      %s84 = sphi 0, %s70
      %s90 = sphi 0, %s92
      %s93 = sphi 0, %s90
      %s94 = sphi 0, %s93
      %s110 = sphi 0, %s94
    $region4: #{tpu_custom_call.1} parent=1 // loop_header_branch
      %15 = sbr.rel (%p13) target = $region8
    $region5: #{tpu_custom_call.1} parent=1 // loop_body
      %s17 = ssub.s32 %s12, 1
      %s18 = ssub.s32 %s12, 2
      %s19 = sadd.s32 %s12, 1
      %s20 = ssub.s32 %s12, %s19
      %p21 = scmp.eq.s32.totalorder %s20, 0
      %s23 = sadd.s32 %s22, 1
      %s24 = scalar_select %p21, %s22, %s23
      %p27 = pneg %p21
      %p28 = scmp.eq.s32.totalorder %s12, 1
      %p29 = por %p27, %p28
      %p30 = scmp.ne.s32.totalorder %s22, %s25
      %p31 = scmp.eq.s32.totalorder %s12, 0
      %p32 = por %p30, %p31
      %p33 = scmp.ne.s32.totalorder %s22, %s25
      %p34 = scmp.eq.s32.totalorder %s17, 1
      %p35 = por %p33, %p34
      %p36 = scmp.ne.s32.totalorder %s25, %s26
      %p37 = scmp.eq.s32.totalorder %s17, 0
      %p38 = por %p36, %p37
      %p39 = scmp.ne.s32.totalorder %s25, %s26
      %p40 = scmp.eq.s32.totalorder %s18, 1
      %p41 = por %p39, %p40
      %p43 = scmp.ne.s32.totalorder %s26, %s42
      %p44 = scmp.eq.s32.totalorder %s18, 0
      %p45 = por %p43, %p44
      %s47 = sadd.s32 %s46, 1
      %p50 = scmp.eq.s32.totalorder %s12, 1
      %p51 = scmp.ne.s32.totalorder %s46, %s48
      %p52 = scmp.eq.s32.totalorder %s12, 0
      %p53 = por %p51, %p52
      %p54 = scmp.ne.s32.totalorder %s46, %s48
      %p55 = scmp.eq.s32.totalorder %s17, 1
      %p56 = por %p54, %p55
      %p57 = scmp.ne.s32.totalorder %s48, %s49
      %p58 = scmp.eq.s32.totalorder %s17, 0
      %p59 = por %p57, %p58
      %p60 = scmp.ne.s32.totalorder %s48, %s49
      %p61 = scmp.eq.s32.totalorder %s18, 1
      %p62 = por %p60, %p61
      %p64 = scmp.ne.s32.totalorder %s49, %s63
      %p65 = scmp.eq.s32.totalorder %s18, 0
      %p66 = por %p64, %p65
      %s68 = sadd.s32 %s67, 1
      %p71 = scmp.eq.s32.totalorder %s12, 1
      %p72 = scmp.ne.s32.totalorder %s67, %s69
      %p73 = scmp.eq.s32.totalorder %s12, 0
      %p74 = por %p72, %p73
      %p75 = scmp.ne.s32.totalorder %s67, %s69
      %p76 = scmp.eq.s32.totalorder %s17, 1
      %p77 = por %p75, %p76
      %p78 = scmp.ne.s32.totalorder %s69, %s70
      %p79 = scmp.eq.s32.totalorder %s17, 0
      %p80 = por %p78, %p79
      %p81 = scmp.ne.s32.totalorder %s69, %s70
      %p82 = scmp.eq.s32.totalorder %s18, 1
      %p83 = por %p81, %p82
      %p85 = scmp.ne.s32.totalorder %s70, %s84
      %p86 = scmp.eq.s32.totalorder %s18, 0
      %p87 = por %p85, %p86
      %s88 = ssub.s32 %s12, %s19
      %p89 = scmp.eq.s32.totalorder %s88, 0
      %s91 = sadd.s32 %s90, 1
      %s92 = scalar_select %p89, %s90, %s91
      %p95 = pneg %p89
      %p96 = scmp.eq.s32.totalorder %s12, 1
      %p97 = por %p95, %p96
      %p98 = scmp.ne.s32.totalorder %s90, %s93
      %p99 = scmp.eq.s32.totalorder %s12, 0
      %p100 = por %p98, %p99
      %p101 = scmp.ne.s32.totalorder %s90, %s93
      %p102 = scmp.eq.s32.totalorder %s17, 1
      %p103 = por %p101, %p102
      %p104 = scmp.ne.s32.totalorder %s93, %s94
      %p105 = scmp.eq.s32.totalorder %s17, 0
      %p106 = por %p104, %p105
      %p107 = scmp.ne.s32.totalorder %s93, %s94
      %p108 = scmp.eq.s32.totalorder %s18, 1
      %p109 = por %p107, %p108
      %p111 = scmp.ne.s32.totalorder %s94, %s110
      %p112 = scmp.eq.s32.totalorder %s18, 0
      %p113 = por %p111, %p112
      %p114 = scmp.le.s32.totalorder 1, %s12
      %p115 = scmp.lt.s32.totalorder %s12, 3
      %p116 = pnand %p114, %p115
      %p117 = pneg %p116
      // Predicated region
      $region9: #{tpu_custom_call.1} parent=5 // pred_check
        _
      $region10: #{tpu_custom_call.1} parent=5 // pred_check_branch
        %119 = sbr.rel (%p116) target = $region12
      $region11: #{tpu_custom_call.1} parent=5 // pred_region
        %s120 = ssub.s32 %s12, 1
        // Predicated region
        $region13: #{tpu_custom_call.1} parent=11 // pred_check
          %p121 = pneg %p59
        $region14: #{tpu_custom_call.1} parent=11 // pred_check_branch
          %123 = sbr.rel (%p121) target = $region16
        $region15: #{tpu_custom_call.1} parent=11 // pred_region
          _
        $region16: #{tpu_custom_call.1} parent=11 // pred_fallthru
          _
        // Predicated region
        $region17: #{tpu_custom_call.1} parent=11 // pred_check
          %p124 = pneg %p80
        $region18: #{tpu_custom_call.1} parent=11 // pred_check_branch
          %126 = sbr.rel (%p124) target = $region20
        $region19: #{tpu_custom_call.1} parent=11 // pred_region
          _
        $region20: #{tpu_custom_call.1} parent=11 // pred_fallthru
          _
      $region12: #{tpu_custom_call.1} parent=5 // pred_fallthru
        _
      %p127 = scmp.lt.s32.totalorder %s12, 2
      // Predicated region
      $region21: #{tpu_custom_call.1} parent=5 // pred_check
        %p128 = pneg %p127
      $region22: #{tpu_custom_call.1} parent=5 // pred_check_branch
        %130 = sbr.rel (%p128) target = $region24
      $region23: #{tpu_custom_call.1} parent=5 // pred_region
        // Predicated region
        $region25: #{tpu_custom_call.1} parent=23 // pred_check
          %p131 = pneg %p32
        $region26: #{tpu_custom_call.1} parent=23 // pred_check_branch
          %133 = sbr.rel (%p131) target = $region28
        $region27: #{tpu_custom_call.1} parent=23 // pred_region
          %s134 = smul.u32 64, %s12
          %s135 = ssub.s32 96, %s134
          %p136 = scmp.lt.s32.totalorder %s135, 64
          %s137 = scalar_select %p136, %s135, 64
          %s138 = smul.u32 128, %s137
          %p139 = scmp.lt.s32.totalorder %s134, 95
          %s140 = scalar_select %p139, %s134, 95
          %s141 = smul.addr %s140, 8
          %s142 = scalar_lea.vmem %s0, %s141
          %s143 = smul.u32 64, %s12
          %s144 = ssub.s32 96, %s143
          %p145 = scmp.lt.s32.totalorder %s144, 64
          %s146 = scalar_select %p145, %s144, 64
          %s147 = smul.u32 128, %s146
        $region28: #{tpu_custom_call.1} parent=23 // pred_fallthru
          _
      $region24: #{tpu_custom_call.1} parent=5 // pred_fallthru
        _
      %p148 = scmp.le.s32.totalorder 1, %s12
      %p149 = scmp.lt.s32.totalorder %s12, 3
      %p150 = pnand %p148, %p149
      %p151 = pneg %p150
      // Predicated region
      $region29: #{tpu_custom_call.1} parent=5 // pred_check
        _
      $region30: #{tpu_custom_call.1} parent=5 // pred_check_branch
        %153 = sbr.rel (%p150) target = $region32
      $region31: #{tpu_custom_call.1} parent=5 // pred_region
        %s154 = ssub.s32 %s12, 1
        %s155 = smul.u32 64, %s17
        %s156 = ssub.s32 96, %s155
        %p157 = scmp.lt.s32.totalorder %s156, 64
        %s158 = scalar_select %p157, %s156, 64
        %s159 = smul.u32 128, %s158
        %p160 = scmp.lt.s32.totalorder %s155, 95
        %s161 = scalar_select %p160, %s155, 95
        %s162 = smul.addr %s161, 8
        %s163 = scalar_lea.vmem %s0, %s162
        %p164 = pneg %p38
        %p165 = pneg %p35
        %p166 = pneg %p59
        %p167 = pneg %p56
        %p168 = pneg %p80
        %p169 = pneg %p77
        %p170 = pneg %p106
        %p171 = pneg %p103
        %s172 = sand.u32 %s93, 1
        %s173 = scalar_lea.sflag [#allocation3], %s172
        %s174 = sand.u32 %s93, 1
        %s175 = smul.addr %s174, 512
        %s176 = scalar_lea.vmem [#allocation2], %s175
        %s177 = smul.u32 64, %s17
        %s178 = ssub.s32 96, %s177
        %p179 = scmp.lt.s32.totalorder %s178, 64
        %s180 = scalar_select %p179, %s178, 64
        %s181 = smul.u32 128, %s180
        %p182 = scmp.lt.s32.totalorder %s177, 95
        %s183 = scalar_select %p182, %s177, 95
        %s184 = smul.addr %s183, 8
        %s185 = scalar_lea.vmem %s0, %s184
        %s186 = smul.u32 64, %s17
        %s187 = ssub.s32 96, %s186
        %p188 = scmp.lt.s32.totalorder %s187, 64
        %s189 = scalar_select %p188, %s187, 64
        %s190 = smul.u32 128, %s189
        %s191 = smul.u32 64, %s17
        %s192 = ssub.s32 96, %s191
        %p193 = scmp.lt.s32.totalorder %s192, 64
        %s194 = scalar_select %p193, %s192, 64
        %s195 = smul.u32 128, %s194
        %v197 = vld [vmem:[%s185] sm:$0xff]
        %v198 = vld [vmem:[%s185 + $0x8] sm:$0xff]
        %v199 = vld [vmem:[%s185 + $0x10] sm:$0xff]
        %v200 = vld [vmem:[%s185 + $0x18] sm:$0xff]
        %v201 = vld [vmem:[%s185 + $0x20] sm:$0xff]
        %v202 = vld [vmem:[%s185 + $0x28] sm:$0xff]
        %v203 = vld [vmem:[%s185 + $0x30] sm:$0xff]
        %v204 = vld [vmem:[%s185 + $0x38] sm:$0xff]
        %v205 = vld [vmem:[%s185 + $0x40] sm:$0xff]
        %v206 = vld [vmem:[%s185 + $0x48] sm:$0xff]
        %v207 = vld [vmem:[%s185 + $0x50] sm:$0xff]
        %v208 = vld [vmem:[%s185 + $0x58] sm:$0xff]
        %v209 = vld [vmem:[%s185 + $0x60] sm:$0xff]
        %v210 = vld [vmem:[%s185 + $0x68] sm:$0xff]
        %v211 = vld [vmem:[%s185 + $0x70] sm:$0xff]
        %v212 = vld [vmem:[%s185 + $0x78] sm:$0xff]
        %v213 = vld [vmem:[%s185 + $0x80] sm:$0xff]
        %v214 = vld [vmem:[%s185 + $0x88] sm:$0xff]
        %v215 = vld [vmem:[%s185 + $0x90] sm:$0xff]
        %v216 = vld [vmem:[%s185 + $0x98] sm:$0xff]
        %v217 = vld [vmem:[%s185 + $0xa0] sm:$0xff]
        %v218 = vld [vmem:[%s185 + $0xa8] sm:$0xff]
        %v219 = vld [vmem:[%s185 + $0xb0] sm:$0xff]
        %v220 = vld [vmem:[%s185 + $0xb8] sm:$0xff]
        %v221 = vld [vmem:[%s185 + $0xc0] sm:$0xff]
        %v222 = vld [vmem:[%s185 + $0xc8] sm:$0xff]
        %v223 = vld [vmem:[%s185 + $0xd0] sm:$0xff]
        %v224 = vld [vmem:[%s185 + $0xd8] sm:$0xff]
        %v225 = vld [vmem:[%s185 + $0xe0] sm:$0xff]
        %v226 = vld [vmem:[%s185 + $0xe8] sm:$0xff]
        %v227 = vld [vmem:[%s185 + $0xf0] sm:$0xff]
        %v228 = vld [vmem:[%s185 + $0xf8] sm:$0xff]
        %v229 = vld [vmem:[%s185 + $0x100] sm:$0xff]
        %v230 = vld [vmem:[%s185 + $0x108] sm:$0xff]
        %v231 = vld [vmem:[%s185 + $0x110] sm:$0xff]
        %v232 = vld [vmem:[%s185 + $0x118] sm:$0xff]
        %v233 = vld [vmem:[%s185 + $0x120] sm:$0xff]
        %v234 = vld [vmem:[%s185 + $0x128] sm:$0xff]
        %v235 = vld [vmem:[%s185 + $0x130] sm:$0xff]
        %v236 = vld [vmem:[%s185 + $0x138] sm:$0xff]
        %v237 = vld [vmem:[%s185 + $0x140] sm:$0xff]
        %v238 = vld [vmem:[%s185 + $0x148] sm:$0xff]
        %v239 = vld [vmem:[%s185 + $0x150] sm:$0xff]
        %v240 = vld [vmem:[%s185 + $0x158] sm:$0xff]
        %v241 = vld [vmem:[%s185 + $0x160] sm:$0xff]
        %v242 = vld [vmem:[%s185 + $0x168] sm:$0xff]
        %v243 = vld [vmem:[%s185 + $0x170] sm:$0xff]
        %v244 = vld [vmem:[%s185 + $0x178] sm:$0xff]
        %v245 = vld [vmem:[%s185 + $0x180] sm:$0xff]
        %v246 = vld [vmem:[%s185 + $0x188] sm:$0xff]
        %v247 = vld [vmem:[%s185 + $0x190] sm:$0xff]
        %v248 = vld [vmem:[%s185 + $0x198] sm:$0xff]
        %v249 = vld [vmem:[%s185 + $0x1a0] sm:$0xff]
        %v250 = vld [vmem:[%s185 + $0x1a8] sm:$0xff]
        %v251 = vld [vmem:[%s185 + $0x1b0] sm:$0xff]
        %v252 = vld [vmem:[%s185 + $0x1b8] sm:$0xff]
        %v253 = vld [vmem:[%s185 + $0x1c0] sm:$0xff]
        %v254 = vld [vmem:[%s185 + $0x1c8] sm:$0xff]
        %v255 = vld [vmem:[%s185 + $0x1d0] sm:$0xff]
        %v256 = vld [vmem:[%s185 + $0x1d8] sm:$0xff]
        %v257 = vld [vmem:[%s185 + $0x1e0] sm:$0xff]
        %v258 = vld [vmem:[%s185 + $0x1e8] sm:$0xff]
        %v259 = vld [vmem:[%s185 + $0x1f0] sm:$0xff]
        %v260 = vld [vmem:[%s185 + $0x1f8] sm:$0xff]
        %v261 = vpack.c.bf16 %v198, %v197
        %v262 = vpack.c.bf16 %v200, %v199
        %v263 = vpack.c.bf16 %v202, %v201
        %v264 = vpack.c.bf16 %v204, %v203
        %v265 = vpack.c.bf16 %v206, %v205
        %v266 = vpack.c.bf16 %v208, %v207
        %v267 = vpack.c.bf16 %v210, %v209
        %v268 = vpack.c.bf16 %v212, %v211
        %v269 = vpack.c.bf16 %v214, %v213
        %v270 = vpack.c.bf16 %v216, %v215
        %v271 = vpack.c.bf16 %v218, %v217
        %v272 = vpack.c.bf16 %v220, %v219
        %v273 = vpack.c.bf16 %v222, %v221
        %v274 = vpack.c.bf16 %v224, %v223
        %v275 = vpack.c.bf16 %v226, %v225
        %v276 = vpack.c.bf16 %v228, %v227
        %v277 = vpack.c.bf16 %v230, %v229
        %v278 = vpack.c.bf16 %v232, %v231
        %v279 = vpack.c.bf16 %v234, %v233
        %v280 = vpack.c.bf16 %v236, %v235
        %v281 = vpack.c.bf16 %v238, %v237
        %v282 = vpack.c.bf16 %v240, %v239
        %v283 = vpack.c.bf16 %v242, %v241
        %v284 = vpack.c.bf16 %v244, %v243
        %v285 = vpack.c.bf16 %v246, %v245
        %v286 = vpack.c.bf16 %v248, %v247
        %v287 = vpack.c.bf16 %v250, %v249
        %v288 = vpack.c.bf16 %v252, %v251
        %v289 = vpack.c.bf16 %v254, %v253
        %v290 = vpack.c.bf16 %v256, %v255
        %v291 = vpack.c.bf16 %v258, %v257
        %v292 = vpack.c.bf16 %v260, %v259
        %v293 = vld [vmem:[%s1] sm:$0xf]
        %v294 = vld [vmem:[%s1 + $0x4] sm:$0xf]
        %v295 = vld [vmem:[%s1 + $0x8] sm:$0xf]
        %v296 = vld [vmem:[%s1 + $0xc] sm:$0xf]
        %v297 = vld [vmem:[%s2] sm:$0x1]
        %v299 = vlaneseq
        %v300 = vshrl.u32 %v299, 7
        %v301 = vsub.s32 0, %v300
        %v302 = vrot.slane %v297, %v301
        %v308 = vunpack.c.l.b16 %v293
        %v309 = vunpack.c.l.b16 %v294
        %v310 = vunpack.c.l.b16 %v295
        %v311 = vunpack.c.l.b16 %v296
        %v312 = vpack.c.b16 %v309, %v308
        %v313 = vpack.c.b16 %v311, %v310
        %vm316 = vcmask 261120
        %v318 = vsel %vm316, %v261, 0
        %v321 = vsel %vm316, %v262, 0
        %v324 = vsel %vm316, %v263, 0
        %v327 = vsel %vm316, %v264, 0
        %v330 = vsel %vm316, %v265, 0
        %v333 = vsel %vm316, %v266, 0
        %v336 = vsel %vm316, %v267, 0
        %v339 = vsel %vm316, %v268, 0
        %v342 = vsel %vm316, %v269, 0
        %v345 = vsel %vm316, %v270, 0
        %v348 = vsel %vm316, %v271, 0
        %v351 = vsel %vm316, %v272, 0
        %v354 = vsel %vm316, %v273, 0
        %v357 = vsel %vm316, %v274, 0
        %v360 = vsel %vm316, %v275, 0
        %v363 = vsel %vm316, %v276, 0
        %v366 = vsel %vm316, %v277, 0
        %v369 = vsel %vm316, %v278, 0
        %v372 = vsel %vm316, %v279, 0
        %v375 = vsel %vm316, %v280, 0
        %v378 = vsel %vm316, %v281, 0
        %v381 = vsel %vm316, %v282, 0
        %v384 = vsel %vm316, %v283, 0
        %v387 = vsel %vm316, %v284, 0
        %v390 = vsel %vm316, %v285, 0
        %v393 = vsel %vm316, %v286, 0
        %v396 = vsel %vm316, %v287, 0
        %v399 = vsel %vm316, %v288, 0
        %v402 = vsel %vm316, %v289, 0
        %v405 = vsel %vm316, %v290, 0
        %v408 = vsel %vm316, %v291, 0
        %v411 = vsel %vm316, %v292, 0
        %413 = vmatprep.subr.bf16.mxu0 0
        %414 = vmatpush1.bf16.msra.mxu0 %v312
        %415 = vmatprep.subr.bf16.mxu0 0
        %416 = vmatpush1.bf16.msra.mxu0 %v313
        %417 = vmatprep.subr.bf16.mxu0 0
        %418 = vmatpush1.bf16.msra.mxu0 0
        %419 = vmatprep.subr.bf16.mxu0 0
        %420 = vmatpush1.bf16.msra.mxu0 0
        %421 = vmatprep.subr.bf16.mxu0 0
        %422 = vmatpush1.bf16.msra.mxu0 0
        %423 = vmatprep.subr.bf16.mxu0 0
        %424 = vmatpush1.bf16.msra.mxu0 0
        %425 = vmatprep.subr.bf16.mxu0 0
        %426 = vmatpush1.bf16.msra.mxu0 0
        %427 = vmatprep.subr.bf16.mxu0 0
        %428 = vmatpush1.bf16.msra.mxu0 0
        %429 = vmatprep.subr.bf16.mxu0 0
        %430 = vmatpush1.bf16.msra.mxu0 0
        %431 = vmatprep.subr.bf16.mxu0 0
        %432 = vmatpush1.bf16.msra.mxu0 0
        %433 = vmatprep.subr.bf16.mxu0 0
        %434 = vmatpush1.bf16.msra.mxu0 0
        %435 = vmatprep.subr.bf16.mxu0 0
        %436 = vmatpush1.bf16.msra.mxu0 0
        %437 = vmatprep.subr.bf16.mxu0 0
        %438 = vmatpush1.bf16.msra.mxu0 0
        %439 = vmatprep.subr.bf16.mxu0 0
        %440 = vmatpush1.bf16.msra.mxu0 0
        %441 = vmatprep.subr.bf16.mxu0 0
        %442 = vmatpush1.bf16.msra.mxu0 0
        %443 = vmatprep.subr.bf16.mxu0 0
        %444 = vmatpush1.bf16.msra.mxu0 0
        %445 = vmatprep.mubr.bf16.mxu0 0
        %446 = vmatmul.mubr.bf16.gmra.mrb[0].mxu0 %v318
        %v447 = vpop.f32.mrb[0].mxu0
        %v448 = vadd.f32 %v302, %v447
        %v449 = vpop.f32.mrb[0].mxu0
        %v450 = vpop.f32.mrb[0].mxu0
        %v451 = vadd.f32 %v302, %v450
        %v452 = vpop.f32.mrb[0].mxu0
        %453 = vmatprep.mubr.bf16.mxu0 0
        %454 = vmatmul.mubr.bf16.gmra.mrb[0].mxu0 %v321
        %v455 = vpop.f32.mrb[0].mxu0
        %v456 = vadd.f32 %v302, %v455
        %v457 = vpop.f32.mrb[0].mxu0
        %v458 = vpop.f32.mrb[0].mxu0
        %v459 = vadd.f32 %v302, %v458
        %v460 = vpop.f32.mrb[0].mxu0
        %461 = vmatprep.mubr.bf16.mxu0 0
        %462 = vmatmul.mubr.bf16.gmra.mrb[0].mxu0 %v324
        %v463 = vpop.f32.mrb[0].mxu0
        %v464 = vadd.f32 %v302, %v463
        %v465 = vpop.f32.mrb[0].mxu0
        %v466 = vpop.f32.mrb[0].mxu0
        %v467 = vadd.f32 %v302, %v466
        %v468 = vpop.f32.mrb[0].mxu0
        %469 = vmatprep.mubr.bf16.mxu0 0
        %470 = vmatmul.mubr.bf16.gmra.mrb[0].mxu0 %v327
        %v471 = vpop.f32.mrb[0].mxu0
        %v472 = vadd.f32 %v302, %v471
        %v473 = vpop.f32.mrb[0].mxu0
        %v474 = vpop.f32.mrb[0].mxu0
        %v475 = vadd.f32 %v302, %v474
        %v476 = vpop.f32.mrb[0].mxu0
        %477 = vmatprep.mubr.bf16.mxu0 0
        %478 = vmatmul.mubr.bf16.gmra.mrb[0].mxu0 %v330
        %v479 = vpop.f32.mrb[0].mxu0
        %v480 = vadd.f32 %v302, %v479
        %v481 = vpop.f32.mrb[0].mxu0
        %v482 = vpop.f32.mrb[0].mxu0
        %v483 = vadd.f32 %v302, %v482
        %v484 = vpop.f32.mrb[0].mxu0
        %485 = vmatprep.mubr.bf16.mxu0 0
        %486 = vmatmul.mubr.bf16.gmra.mrb[0].mxu0 %v333
        %v487 = vpop.f32.mrb[0].mxu0
        %v488 = vadd.f32 %v302, %v487
        %v489 = vpop.f32.mrb[0].mxu0
        %v490 = vpop.f32.mrb[0].mxu0
        %v491 = vadd.f32 %v302, %v490
        %v492 = vpop.f32.mrb[0].mxu0
        %493 = vmatprep.mubr.bf16.mxu0 0
        %494 = vmatmul.mubr.bf16.gmra.mrb[0].mxu0 %v336
        %v495 = vpop.f32.mrb[0].mxu0
        %v496 = vadd.f32 %v302, %v495
        %v497 = vpop.f32.mrb[0].mxu0
        %v498 = vpop.f32.mrb[0].mxu0
        %v499 = vadd.f32 %v302, %v498
        %v500 = vpop.f32.mrb[0].mxu0
        %501 = vmatprep.mubr.bf16.mxu0 0
        %502 = vmatmul.mubr.bf16.gmra.mrb[0].mxu0 %v339
        %v503 = vpop.f32.mrb[0].mxu0
        %v504 = vadd.f32 %v302, %v503
        %v505 = vpop.f32.mrb[0].mxu0
        %v506 = vpop.f32.mrb[0].mxu0
        %v507 = vadd.f32 %v302, %v506
        %v508 = vpop.f32.mrb[0].mxu0
        %509 = vmatprep.mubr.bf16.mxu0 0
        %510 = vmatmul.mubr.bf16.gmra.mrb[0].mxu0 %v342
        %v511 = vpop.f32.mrb[0].mxu0
        %v512 = vadd.f32 %v302, %v511
        %v513 = vpop.f32.mrb[0].mxu0
        %v514 = vpop.f32.mrb[0].mxu0
        %v515 = vadd.f32 %v302, %v514
        %v516 = vpop.f32.mrb[0].mxu0
        %517 = vmatprep.mubr.bf16.mxu0 0
        %518 = vmatmul.mubr.bf16.gmra.mrb[0].mxu0 %v345
        %v519 = vpop.f32.mrb[0].mxu0
        %v520 = vadd.f32 %v302, %v519
        %v521 = vpop.f32.mrb[0].mxu0
        %v522 = vpop.f32.mrb[0].mxu0
        %v523 = vadd.f32 %v302, %v522
        %v524 = vpop.f32.mrb[0].mxu0
        %525 = vmatprep.mubr.bf16.mxu0 0
        %526 = vmatmul.mubr.bf16.gmra.mrb[0].mxu0 %v348
        %v527 = vpop.f32.mrb[0].mxu0
        %v528 = vadd.f32 %v302, %v527
        %v529 = vpop.f32.mrb[0].mxu0
        %v530 = vpop.f32.mrb[0].mxu0
        %v531 = vadd.f32 %v302, %v530
        %v532 = vpop.f32.mrb[0].mxu0
        %533 = vmatprep.mubr.bf16.mxu0 0
        %534 = vmatmul.mubr.bf16.gmra.mrb[0].mxu0 %v351
        %v535 = vpop.f32.mrb[0].mxu0
        %v536 = vadd.f32 %v302, %v535
        %v537 = vpop.f32.mrb[0].mxu0
        %v538 = vpop.f32.mrb[0].mxu0
        %v539 = vadd.f32 %v302, %v538
        %v540 = vpop.f32.mrb[0].mxu0
        %541 = vmatprep.mubr.bf16.mxu0 0
        %542 = vmatmul.mubr.bf16.gmra.mrb[0].mxu0 %v354
        %v543 = vpop.f32.mrb[0].mxu0
        %v544 = vadd.f32 %v302, %v543
        %v545 = vpop.f32.mrb[0].mxu0
        %v546 = vpop.f32.mrb[0].mxu0
        %v547 = vadd.f32 %v302, %v546
        %v548 = vpop.f32.mrb[0].mxu0
        %549 = vmatprep.mubr.bf16.mxu0 0
        %550 = vmatmul.mubr.bf16.gmra.mrb[0].mxu0 %v357
        %v551 = vpop.f32.mrb[0].mxu0
        %v552 = vadd.f32 %v302, %v551
        %v553 = vpop.f32.mrb[0].mxu0
        %v554 = vpop.f32.mrb[0].mxu0
        %v555 = vadd.f32 %v302, %v554
        %v556 = vpop.f32.mrb[0].mxu0
        %557 = vmatprep.mubr.bf16.mxu0 0
        %558 = vmatmul.mubr.bf16.gmra.mrb[0].mxu0 %v360
        %v559 = vpop.f32.mrb[0].mxu0
        %v560 = vadd.f32 %v302, %v559
        %v561 = vpop.f32.mrb[0].mxu0
        %v562 = vpop.f32.mrb[0].mxu0
        %v563 = vadd.f32 %v302, %v562
        %v564 = vpop.f32.mrb[0].mxu0
        %565 = vmatprep.mubr.bf16.mxu0 0
        %566 = vmatmul.mubr.bf16.gmra.mrb[0].mxu0 %v363
        %v567 = vpop.f32.mrb[0].mxu0
        %v568 = vadd.f32 %v302, %v567
        %v569 = vpop.f32.mrb[0].mxu0
        %v570 = vpop.f32.mrb[0].mxu0
        %v571 = vadd.f32 %v302, %v570
        %v572 = vpop.f32.mrb[0].mxu0
        %573 = vmatprep.mubr.bf16.mxu0 0
        %574 = vmatmul.mubr.bf16.gmra.mrb[0].mxu0 %v366
        %v575 = vpop.f32.mrb[0].mxu0
        %v576 = vadd.f32 %v302, %v575
        %v577 = vpop.f32.mrb[0].mxu0
        %v578 = vpop.f32.mrb[0].mxu0
        %v579 = vadd.f32 %v302, %v578
        %v580 = vpop.f32.mrb[0].mxu0
        %581 = vmatprep.mubr.bf16.mxu0 0
        %582 = vmatmul.mubr.bf16.gmra.mrb[0].mxu0 %v369
        %v583 = vpop.f32.mrb[0].mxu0
        %v584 = vadd.f32 %v302, %v583
        %v585 = vpop.f32.mrb[0].mxu0
        %v586 = vpop.f32.mrb[0].mxu0
        %v587 = vadd.f32 %v302, %v586
        %v588 = vpop.f32.mrb[0].mxu0
        %589 = vmatprep.mubr.bf16.mxu0 0
        %590 = vmatmul.mubr.bf16.gmra.mrb[0].mxu0 %v372
        %v591 = vpop.f32.mrb[0].mxu0
        %v592 = vadd.f32 %v302, %v591
        %v593 = vpop.f32.mrb[0].mxu0
        %v594 = vpop.f32.mrb[0].mxu0
        %v595 = vadd.f32 %v302, %v594
        %v596 = vpop.f32.mrb[0].mxu0
        %597 = vmatprep.mubr.bf16.mxu0 0
        %598 = vmatmul.mubr.bf16.gmra.mrb[0].mxu0 %v375
        %v599 = vpop.f32.mrb[0].mxu0
        %v600 = vadd.f32 %v302, %v599
        %v601 = vpop.f32.mrb[0].mxu0
        %v602 = vpop.f32.mrb[0].mxu0
        %v603 = vadd.f32 %v302, %v602
        %v604 = vpop.f32.mrb[0].mxu0
        %605 = vmatprep.mubr.bf16.mxu0 0
        %606 = vmatmul.mubr.bf16.gmra.mrb[0].mxu0 %v378
        %v607 = vpop.f32.mrb[0].mxu0
        %v608 = vadd.f32 %v302, %v607
        %v609 = vpop.f32.mrb[0].mxu0
        %v610 = vpop.f32.mrb[0].mxu0
        %v611 = vadd.f32 %v302, %v610
        %v612 = vpop.f32.mrb[0].mxu0
        %613 = vmatprep.mubr.bf16.mxu0 0
        %614 = vmatmul.mubr.bf16.gmra.mrb[0].mxu0 %v381
        %v615 = vpop.f32.mrb[0].mxu0
        %v616 = vadd.f32 %v302, %v615
        %v617 = vpop.f32.mrb[0].mxu0
        %v618 = vpop.f32.mrb[0].mxu0
        %v619 = vadd.f32 %v302, %v618
        %v620 = vpop.f32.mrb[0].mxu0
        %621 = vmatprep.mubr.bf16.mxu0 0
        %622 = vmatmul.mubr.bf16.gmra.mrb[0].mxu0 %v384
        %v623 = vpop.f32.mrb[0].mxu0
        %v624 = vadd.f32 %v302, %v623
        %v625 = vpop.f32.mrb[0].mxu0
        %v626 = vpop.f32.mrb[0].mxu0
        %v627 = vadd.f32 %v302, %v626
        %v628 = vpop.f32.mrb[0].mxu0
        %629 = vmatprep.mubr.bf16.mxu0 0
        %630 = vmatmul.mubr.bf16.gmra.mrb[0].mxu0 %v387
        %v631 = vpop.f32.mrb[0].mxu0
        %v632 = vadd.f32 %v302, %v631
        %v633 = vpop.f32.mrb[0].mxu0
        %v634 = vpop.f32.mrb[0].mxu0
        %v635 = vadd.f32 %v302, %v634
        %v636 = vpop.f32.mrb[0].mxu0
        %637 = vmatprep.mubr.bf16.mxu0 0
        %638 = vmatmul.mubr.bf16.gmra.mrb[0].mxu0 %v390
        %v639 = vpop.f32.mrb[0].mxu0
        %v640 = vadd.f32 %v302, %v639
        %v641 = vpop.f32.mrb[0].mxu0
        %v642 = vpop.f32.mrb[0].mxu0
        %v643 = vadd.f32 %v302, %v642
        %v644 = vpop.f32.mrb[0].mxu0
        %645 = vmatprep.mubr.bf16.mxu0 0
        %646 = vmatmul.mubr.bf16.gmra.mrb[0].mxu0 %v393
        %v647 = vpop.f32.mrb[0].mxu0
        %v648 = vadd.f32 %v302, %v647
        %v649 = vpop.f32.mrb[0].mxu0
        %v650 = vpop.f32.mrb[0].mxu0
        %v651 = vadd.f32 %v302, %v650
        %v652 = vpop.f32.mrb[0].mxu0
        %653 = vmatprep.mubr.bf16.mxu0 0
        %654 = vmatmul.mubr.bf16.gmra.mrb[0].mxu0 %v396
        %v655 = vpop.f32.mrb[0].mxu0
        %v656 = vadd.f32 %v302, %v655
        %v657 = vpop.f32.mrb[0].mxu0
        %v658 = vpop.f32.mrb[0].mxu0
        %v659 = vadd.f32 %v302, %v658
        %v660 = vpop.f32.mrb[0].mxu0
        %661 = vmatprep.mubr.bf16.mxu0 0
        %662 = vmatmul.mubr.bf16.gmra.mrb[0].mxu0 %v399
        %v663 = vpop.f32.mrb[0].mxu0
        %v664 = vadd.f32 %v302, %v663
        %v665 = vpop.f32.mrb[0].mxu0
        %v666 = vpop.f32.mrb[0].mxu0
        %v667 = vadd.f32 %v302, %v666
        %v668 = vpop.f32.mrb[0].mxu0
        %669 = vmatprep.mubr.bf16.mxu0 0
        %670 = vmatmul.mubr.bf16.gmra.mrb[0].mxu0 %v402
        %v671 = vpop.f32.mrb[0].mxu0
        %v672 = vadd.f32 %v302, %v671
        %v673 = vpop.f32.mrb[0].mxu0
        %v674 = vpop.f32.mrb[0].mxu0
        %v675 = vadd.f32 %v302, %v674
        %v676 = vpop.f32.mrb[0].mxu0
        %677 = vmatprep.mubr.bf16.mxu0 0
        %678 = vmatmul.mubr.bf16.gmra.mrb[0].mxu0 %v405
        %v679 = vpop.f32.mrb[0].mxu0
        %v680 = vadd.f32 %v302, %v679
        %v681 = vpop.f32.mrb[0].mxu0
        %v682 = vpop.f32.mrb[0].mxu0
        %v683 = vadd.f32 %v302, %v682
        %v684 = vpop.f32.mrb[0].mxu0
        %685 = vmatprep.mubr.bf16.mxu0 0
        %686 = vmatmul.mubr.bf16.gmra.mrb[0].mxu0 %v408
        %v687 = vpop.f32.mrb[0].mxu0
        %v688 = vadd.f32 %v302, %v687
        %v689 = vpop.f32.mrb[0].mxu0
        %v690 = vpop.f32.mrb[0].mxu0
        %v691 = vadd.f32 %v302, %v690
        %v692 = vpop.f32.mrb[0].mxu0
        %693 = vmatprep.mubr.bf16.mxu0 0
        %694 = vmatmul.mubr.bf16.gmra.mrb[0].mxu0 %v411
        %v695 = vpop.f32.mrb[0].mxu0
        %v696 = vadd.f32 %v302, %v695
        %v697 = vpop.f32.mrb[0].mxu0
        %v698 = vpop.f32.mrb[0].mxu0
        %v699 = vadd.f32 %v302, %v698
        %v700 = vpop.f32.mrb[0].mxu0
        %701 = vdwg.mxu0
        %702 = vst [vmem:[%s176] sm:$0xff] %v448
        %703 = vst [vmem:[%s176 + $0x8] sm:$0xff] %v451
        %704 = vst [vmem:[%s176 + $0x10] sm:$0xff] %v456
        %705 = vst [vmem:[%s176 + $0x18] sm:$0xff] %v459
        %706 = vst [vmem:[%s176 + $0x20] sm:$0xff] %v464
        %707 = vst [vmem:[%s176 + $0x28] sm:$0xff] %v467
        %708 = vst [vmem:[%s176 + $0x30] sm:$0xff] %v472
        %709 = vst [vmem:[%s176 + $0x38] sm:$0xff] %v475
        %710 = vst [vmem:[%s176 + $0x40] sm:$0xff] %v480
        %711 = vst [vmem:[%s176 + $0x48] sm:$0xff] %v483
        %712 = vst [vmem:[%s176 + $0x50] sm:$0xff] %v488
        %713 = vst [vmem:[%s176 + $0x58] sm:$0xff] %v491
        %714 = vst [vmem:[%s176 + $0x60] sm:$0xff] %v496
        %715 = vst [vmem:[%s176 + $0x68] sm:$0xff] %v499
        %716 = vst [vmem:[%s176 + $0x70] sm:$0xff] %v504
        %717 = vst [vmem:[%s176 + $0x78] sm:$0xff] %v507
        %718 = vst [vmem:[%s176 + $0x80] sm:$0xff] %v512
        %719 = vst [vmem:[%s176 + $0x88] sm:$0xff] %v515
        %720 = vst [vmem:[%s176 + $0x90] sm:$0xff] %v520
        %721 = vst [vmem:[%s176 + $0x98] sm:$0xff] %v523
        %722 = vst [vmem:[%s176 + $0xa0] sm:$0xff] %v528
        %723 = vst [vmem:[%s176 + $0xa8] sm:$0xff] %v531
        %724 = vst [vmem:[%s176 + $0xb0] sm:$0xff] %v536
        %725 = vst [vmem:[%s176 + $0xb8] sm:$0xff] %v539
        %726 = vst [vmem:[%s176 + $0xc0] sm:$0xff] %v544
        %727 = vst [vmem:[%s176 + $0xc8] sm:$0xff] %v547
        %728 = vst [vmem:[%s176 + $0xd0] sm:$0xff] %v552
        %729 = vst [vmem:[%s176 + $0xd8] sm:$0xff] %v555
        %730 = vst [vmem:[%s176 + $0xe0] sm:$0xff] %v560
        %731 = vst [vmem:[%s176 + $0xe8] sm:$0xff] %v563
        %732 = vst [vmem:[%s176 + $0xf0] sm:$0xff] %v568
        %733 = vst [vmem:[%s176 + $0xf8] sm:$0xff] %v571
        %734 = vst [vmem:[%s176 + $0x100] sm:$0xff] %v576
        %735 = vst [vmem:[%s176 + $0x108] sm:$0xff] %v579
        %736 = vst [vmem:[%s176 + $0x110] sm:$0xff] %v584
        %737 = vst [vmem:[%s176 + $0x118] sm:$0xff] %v587
        %738 = vst [vmem:[%s176 + $0x120] sm:$0xff] %v592
        %739 = vst [vmem:[%s176 + $0x128] sm:$0xff] %v595
        %740 = vst [vmem:[%s176 + $0x130] sm:$0xff] %v600
        %741 = vst [vmem:[%s176 + $0x138] sm:$0xff] %v603
        %742 = vst [vmem:[%s176 + $0x140] sm:$0xff] %v608
        %743 = vst [vmem:[%s176 + $0x148] sm:$0xff] %v611
        %744 = vst [vmem:[%s176 + $0x150] sm:$0xff] %v616
        %745 = vst [vmem:[%s176 + $0x158] sm:$0xff] %v619
        %746 = vst [vmem:[%s176 + $0x160] sm:$0xff] %v624
        %747 = vst [vmem:[%s176 + $0x168] sm:$0xff] %v627
        %748 = vst [vmem:[%s176 + $0x170] sm:$0xff] %v632
        %749 = vst [vmem:[%s176 + $0x178] sm:$0xff] %v635
        %750 = vst [vmem:[%s176 + $0x180] sm:$0xff] %v640
        %751 = vst [vmem:[%s176 + $0x188] sm:$0xff] %v643
        %752 = vst [vmem:[%s176 + $0x190] sm:$0xff] %v648
        %753 = vst [vmem:[%s176 + $0x198] sm:$0xff] %v651
        %754 = vst [vmem:[%s176 + $0x1a0] sm:$0xff] %v656
        %755 = vst [vmem:[%s176 + $0x1a8] sm:$0xff] %v659
        %756 = vst [vmem:[%s176 + $0x1b0] sm:$0xff] %v664
        %757 = vst [vmem:[%s176 + $0x1b8] sm:$0xff] %v667
        %758 = vst [vmem:[%s176 + $0x1c0] sm:$0xff] %v672
        %759 = vst [vmem:[%s176 + $0x1c8] sm:$0xff] %v675
        %760 = vst [vmem:[%s176 + $0x1d0] sm:$0xff] %v680
        %761 = vst [vmem:[%s176 + $0x1d8] sm:$0xff] %v683
        %762 = vst [vmem:[%s176 + $0x1e0] sm:$0xff] %v688
        %763 = vst [vmem:[%s176 + $0x1e8] sm:$0xff] %v691
        %764 = vst [vmem:[%s176 + $0x1f0] sm:$0xff] %v696
        %765 = vst [vmem:[%s176 + $0x1f8] sm:$0xff] %v699
        %s766 = sand.u32 %s93, 1
        %s767 = scalar_lea.sflag [#allocation3], %s766
        %s768 = sand.u32 %s93, 1
        %s769 = smul.addr %s768, 512
        %s770 = scalar_lea.vmem [#allocation2], %s769
        // Predicated region
        $region33: #{tpu_custom_call.1} parent=31 // pred_check
          %p771 = pneg %p103
        $region34: #{tpu_custom_call.1} parent=31 // pred_check_branch
          %773 = sbr.rel (%p771) target = $region36
        $region35: #{tpu_custom_call.1} parent=31 // pred_region
          %s774 = smul.u32 64, %s17
          %s775 = ssub.s32 96, %s774
          %p776 = scmp.lt.s32.totalorder %s775, 64
          %s777 = scalar_select %p776, %s775, 64
          %s778 = smul.u32 128, %s777
          %s780 = ssub.s32 8192, %s778
          %781 = vsyncadd %s767, %s780
          %p782 = scmp.ne.s32.totalorder 0, %s778
          %s783 = smul.addr %s774, 128
          %s784 = scalar_lea.hbm %s3, %s783
          %s785 = smul.u32 8, %s777
          %s786 = sshll.u32 %s770, 4
          %s787 = int_to_ptr.vmem [resolvable:$true] %s786
          %s788 = sshll.u32 %s785, 4
          %792 = dma.vmem_to_hbm [thread:$0]  (%p782), %s787, %s788, %s784, %s767, 128, 128, 8
        $region36: #{tpu_custom_call.1} parent=31 // pred_fallthru
          _
      $region32: #{tpu_custom_call.1} parent=5 // pred_fallthru
        _
      %p793 = scmp.le.s32.totalorder 2, %s12
      // Predicated region
      $region37: #{tpu_custom_call.1} parent=5 // pred_check
        %p794 = pneg %p793
      $region38: #{tpu_custom_call.1} parent=5 // pred_check_branch
        %796 = sbr.rel (%p794) target = $region40
      $region39: #{tpu_custom_call.1} parent=5 // pred_region
        %s797 = ssub.s32 %s12, 2
        // Predicated region
        $region41: #{tpu_custom_call.1} parent=39 // pred_check
          %p798 = pneg %p109
        $region42: #{tpu_custom_call.1} parent=39 // pred_check_branch
          %800 = sbr.rel (%p798) target = $region44
        $region43: #{tpu_custom_call.1} parent=39 // pred_region
          %s801 = sand.u32 %s94, 1
          %s802 = scalar_lea.sflag [#allocation3], %s801
          %s803 = sand.u32 %s94, 1
          %s804 = smul.addr %s803, 512
          %s805 = scalar_lea.vmem [#allocation2], %s804
          %806 = dma.done %s802, 8192
        $region44: #{tpu_custom_call.1} parent=39 // pred_fallthru
          _
      $region40: #{tpu_custom_call.1} parent=5 // pred_fallthru
        _
    $region6: #{tpu_custom_call.1} parent=1 // loop_footer
      %s16 = sadd.s32 1, %s12
    $region7: #{tpu_custom_call.1} parent=1 // loop_footer_branch
      %11 = sbr.rel target = $region3
    $region8: #{tpu_custom_call.1} parent=1 // loop_exit
      _
    %807 = vsyncpa [#allocation3], 1
    %s808 = scalar_lea.sflag [#allocation3], 1
    %809 = vsyncpa %s808, 1

</llo_original>
